<compile_context>
chip_gen: v6e
topology: v6e:2x2x1
jax: 0.10.0
libtpu: 0.0.40
codegen_flags: <defaults>
</compile_context>

<pallas_src>
import functools

import jax
import jax.numpy as jnp
from jax.experimental import pallas as pl
from jax.experimental.pallas import tpu as pltpu


def haar_synthesis(h, dtype=jnp.float32):
    """Unnormalized Haar synthesis rows (entries 0/±1) plus the overall 2-D scale.

    X = scale * (Va^T LL Va + Va^T LH Vd + Vd^T HL Va + Vd^T HH Vd),  scale = 1/2,
    where Va[i, 2i] = Va[i, 2i+1] = 1 and Vd[i, 2i] = 1, Vd[i, 2i+1] = -1.
    (Equivalent to the orthonormal convention Ua = Va/sqrt(2), Ud = Vd/sqrt(2).)
    """
    L = 2 * h
    i = jnp.arange(h)[:, None]
    j = jnp.arange(L)[None, :]
    va = ((j == 2 * i) | (j == 2 * i + 1)).astype(dtype)
    vd = (j == 2 * i).astype(dtype) - (j == 2 * i + 1).astype(dtype)
    return va, vd, 0.5


def _pick_batch_tile(B, h, itemsize, target_bytes=2 << 20):
    """Batch elements per grid step: ~2 MiB of tile data, TB | B, >=2 steps when B>=2."""
    per_b = 8 * h * h * itemsize            # 4 sub-bands (h,h) + one (2h,2h) output
    cap = max(1, target_bytes // max(per_b, 1))
    cap = min(cap, 8)                       # bound in-kernel unroll
    if B >= 2:
        cap = min(cap, max(1, B // 2))      # keep >=2 grid steps (v7x megacore)
    tb = 1
    for d in range(1, min(cap, B) + 1):
        if B % d == 0:
            tb = d
    return tb


def _inv_wavelet_kernel(va_ref, vd_ref, vat_ref, vdt_ref, ll_ref, hf_ref, out_ref,
                        *, scale):
    # va/vd   : (h, L)  1-D synthesis rows (low / high), broadcast across the grid
    # vat/vdt : (L, h)  pre-transposed copies (no in-kernel transposition needed)
    # ll_ref  : (TB, h, h)    low-pass band, TB batch elements per grid step
    # hf_ref  : (TB, 3, h, h) detail bands (LH, HL, HH)
    # out_ref : (TB, L, L)    reconstructed x_{j-1}
    va = va_ref[...]
    vd = vd_ref[...]
    vat = vat_ref[...]
    vdt = vdt_ref[...]
    tb = ll_ref.shape[0]
    for t in range(tb):                      # small static unroll (TB <= 8)
        ll = ll_ref[t].astype(jnp.float32)
        lh = hf_ref[t, 0].astype(jnp.float32)
        hl = hf_ref[t, 1].astype(jnp.float32)
        hh = hf_ref[t, 2].astype(jnp.float32)
        # Column (lane-axis) synthesis:  (h, h) @ (h, L) -> (h, L)
        r_low = (jnp.dot(ll, va, preferred_element_type=jnp.float32)
                 + jnp.dot(lh, vd, preferred_element_type=jnp.float32))
        r_high = (jnp.dot(hl, va, preferred_element_type=jnp.float32)
                  + jnp.dot(hh, vd, preferred_element_type=jnp.float32))
        # Row (sublane-axis) synthesis:  (L, h) @ (h, L) -> (L, L)
        x = (jnp.dot(vat, r_low, preferred_element_type=jnp.float32)
             + jnp.dot(vdt, r_high, preferred_element_type=jnp.float32))
        out_ref[t] = (x * scale).astype(out_ref.dtype)


def reconstruct_wav(very_low, hf, synthesis=None):
    """Inverse separable 2-D wavelet transform: (B,h,h),(B,3,h,h) -> (B,2h,2h)."""
    B, h, h2 = very_low.shape
    assert h == h2, "very_low must be square (B, L/2, L/2)"
    assert hf.shape == (B, 3, h, h), "hf must be (B, 3, L/2, L/2)"
    L = 2 * h

    if synthesis is None:
        va, vd, scale = haar_synthesis(h)
    else:
        va, vd, scale = synthesis
    va = va.astype(jnp.float32)
    vd = vd.astype(jnp.float32)
    vat = va.T
    vdt = vd.T

    tb = _pick_batch_tile(B, h, jnp.dtype(very_low.dtype).itemsize)
    grid = (B // tb,)

    return pl.pallas_call(
        functools.partial(_inv_wavelet_kernel, scale=float(scale)),
        out_shape=jax.ShapeDtypeStruct((B, L, L), very_low.dtype),
        grid_spec=pltpu.PrefetchScalarGridSpec(
            num_scalar_prefetch=0,
            grid=grid,
            in_specs=[
                pl.BlockSpec((h, L), lambda b: (0, 0)),                # va (broadcast)
                pl.BlockSpec((h, L), lambda b: (0, 0)),                # vd
                pl.BlockSpec((L, h), lambda b: (0, 0)),                # va^T
                pl.BlockSpec((L, h), lambda b: (0, 0)),                # vd^T
                pl.BlockSpec((tb, h, h), lambda b: (b, 0, 0)),         # very_low
                pl.BlockSpec((tb, 3, h, h), lambda b: (b, 0, 0, 0)),   # hf
            ],
            out_specs=pl.BlockSpec((tb, L, L), lambda b: (b, 0, 0)),
        ),
        compiler_params=pltpu.CompilerParams(
            dimension_semantics=("parallel",),
            vmem_limit_bytes=32 * 1024 * 1024,
        ),
    )(va, vd, vat, vdt, very_low, hf)


# ----------------------- pure-JAX references (exact, no matmul) -----------------------

def haar_forward_2d_ref(x):
    """Orthonormal 2-D Haar analysis used to generate test inputs (elementwise, exact)."""
    x00 = x[:, 0::2, 0::2]
    x01 = x[:, 0::2, 1::2]
    x10 = x[:, 1::2, 0::2]
    x11 = x[:, 1::2, 1::2]
    ll = 0.5 * (x00 + x01 + x10 + x11)
    lh = 0.5 * (x00 - x01 + x10 - x11)
    hl = 0.5 * (x00 + x01 - x10 - x11)
    hh = 0.5 * (x00 - x01 - x10 + x11)
    return ll, jnp.stack([lh, hl, hh], axis=1)


def inverse_2d_ref(very_low, hf):
    """Reference inverse (elementwise, exact)."""
    ll = very_low
    lh, hl, hh = hf[:, 0], hf[:, 1], hf[:, 2]
    B, h, _ = ll.shape
    x = jnp.zeros((B, 2 * h, 2 * h), ll.dtype)
    x = x.at[:, 0::2, 0::2].set(0.5 * (ll + lh + hl + hh))
    x = x.at[:, 0::2, 1::2].set(0.5 * (ll - lh + hl - hh))
    x = x.at[:, 1::2, 0::2].set(0.5 * (ll + lh - hl - hh))
    x = x.at[:, 1::2, 1::2].set(0.5 * (ll - lh - hl + hh))
    return x


if __name__ == "__main__":
    key = jax.random.PRNGKey(0)

    def run_case(case_key, B, L):
        h = L // 2
        # Integer-valued test data keeps every MXU operand exactly representable in
        # bf16, so the checks are independent of the default TPU matmul precision.
        x = jnp.round(3.0 * jax.random.normal(case_key, (B, L, L), jnp.float32))
        very_low, hf = haar_forward_2d_ref(x)          # (B,h,h), (B,3,h,h)
        out = reconstruct_wav(very_low, hf)
        jax.block_until_ready(out)
        ref = inverse_2d_ref(very_low, hf)
        assert out.shape == (B, L, L)
        assert bool(jnp.allclose(out, ref, atol=1e-5, rtol=1e-5))
        assert bool(jnp.allclose(out, x, atol=1e-5, rtol=1e-5))    # perfect reconstruction

    k0, k1 = jax.random.split(key)
    run_case(k0, B=2, L=16)   # TB=1, grid=(2,)
    run_case(k1, B=4, L=32)   # TB=2, grid=(2,)
    print("KERNEL_OK")
</pallas_src>

<mosaic_0001>
module attributes {stable_mosaic.version = 11 : i64} {
  func.func @_inv_wavelet_kernel(%arg0: i32, %arg1: memref<8x16xf32, #tpu.memory_space<vmem>>, %arg2: memref<8x16xf32, #tpu.memory_space<vmem>>, %arg3: memref<16x8xf32, #tpu.memory_space<vmem>>, %arg4: memref<16x8xf32, #tpu.memory_space<vmem>>, %arg5: memref<1x8x8xf32, #tpu.memory_space<vmem>>, %arg6: memref<1x3x8x8xf32, #tpu.memory_space<vmem>>, %arg7: memref<1x16x16xf32, #tpu.memory_space<vmem>>) attributes {dimension_semantics = [#tpu.dimension_semantics<parallel>], iteration_bounds = array<i64: 2>, scalar_prefetch = 0 : i64, scratch_operands = 0 : i64, tpu.core_type = #tpu.core_type<tc>, window_params = [{pipeline_mode = #tpu.pipeline_mode<synchronous>, transform_indices = @transform_0, window_bounds = array<i64: 8, 16>}, {pipeline_mode = #tpu.pipeline_mode<synchronous>, transform_indices = @transform_1, window_bounds = array<i64: 8, 16>}, {pipeline_mode = #tpu.pipeline_mode<synchronous>, transform_indices = @transform_2, window_bounds = array<i64: 16, 8>}, {pipeline_mode = #tpu.pipeline_mode<synchronous>, transform_indices = @transform_3, window_bounds = array<i64: 16, 8>}, {transform_indices = @transform_4, window_bounds = array<i64: 1, 8, 8>}, {transform_indices = @transform_5, window_bounds = array<i64: 1, 3, 8, 8>}, {transform_indices = @transform_6, window_bounds = array<i64: 1, 16, 16>}]} {
    %c0 = arith.constant 0 : index
    %c0_0 = arith.constant 0 : index
    %0 = vector.load %arg1[%c0, %c0_0] : memref<8x16xf32, #tpu.memory_space<vmem>>, vector<8x16xf32>
    %c0_1 = arith.constant 0 : index
    %c0_2 = arith.constant 0 : index
    %1 = vector.load %arg2[%c0_1, %c0_2] : memref<8x16xf32, #tpu.memory_space<vmem>>, vector<8x16xf32>
    %c0_3 = arith.constant 0 : index
    %c0_4 = arith.constant 0 : index
    %2 = vector.load %arg3[%c0_3, %c0_4] : memref<16x8xf32, #tpu.memory_space<vmem>>, vector<16x8xf32>
    %c0_5 = arith.constant 0 : index
    %c0_6 = arith.constant 0 : index
    %3 = vector.load %arg4[%c0_5, %c0_6] : memref<16x8xf32, #tpu.memory_space<vmem>>, vector<16x8xf32>
    %c0_7 = arith.constant 0 : index
    %c0_8 = arith.constant 0 : index
    %c0_9 = arith.constant 0 : index
    %4 = vector.load %arg5[%c0_7, %c0_8, %c0_9] : memref<1x8x8xf32, #tpu.memory_space<vmem>>, vector<1x8x8xf32>
    %5 = vector.shape_cast %4 : vector<1x8x8xf32> to vector<8x8xf32>
    %c0_10 = arith.constant 0 : index
    %c0_11 = arith.constant 0 : index
    %c0_12 = arith.constant 0 : index
    %c0_13 = arith.constant 0 : index
    %6 = vector.load %arg6[%c0_10, %c0_11, %c0_12, %c0_13] : memref<1x3x8x8xf32, #tpu.memory_space<vmem>>, vector<1x1x8x8xf32>
    %7 = vector.shape_cast %6 : vector<1x1x8x8xf32> to vector<8x8xf32>
    %c0_14 = arith.constant 0 : index
    %c1 = arith.constant 1 : index
    %c0_15 = arith.constant 0 : index
    %c0_16 = arith.constant 0 : index
    %8 = vector.load %arg6[%c0_14, %c1, %c0_15, %c0_16] : memref<1x3x8x8xf32, #tpu.memory_space<vmem>>, vector<1x1x8x8xf32>
    %9 = vector.shape_cast %8 : vector<1x1x8x8xf32> to vector<8x8xf32>
    %c0_17 = arith.constant 0 : index
    %c2 = arith.constant 2 : index
    %c0_18 = arith.constant 0 : index
    %c0_19 = arith.constant 0 : index
    %10 = vector.load %arg6[%c0_17, %c2, %c0_18, %c0_19] : memref<1x3x8x8xf32, #tpu.memory_space<vmem>>, vector<1x1x8x8xf32>
    %11 = vector.shape_cast %10 : vector<1x1x8x8xf32> to vector<8x8xf32>
    %cst = arith.constant dense<0.000000e+00> : vector<8x16xf32>
    %12 = tpu.matmul %5, %0, %cst {dimension_numbers = #tpu.dot_dimension_numbers<[1], [0], [0], [1], [0, 0, 1, 1], [], []>} : vector<8x8xf32>, vector<8x16xf32>, vector<8x16xf32> -> vector<8x16xf32>
    %cst_20 = arith.constant dense<0.000000e+00> : vector<8x16xf32>
    %13 = tpu.matmul %7, %1, %cst_20 {dimension_numbers = #tpu.dot_dimension_numbers<[1], [0], [0], [1], [0, 0, 1, 1], [], []>} : vector<8x8xf32>, vector<8x16xf32>, vector<8x16xf32> -> vector<8x16xf32>
    %14 = arith.addf %12, %13 : vector<8x16xf32>
    %cst_21 = arith.constant dense<0.000000e+00> : vector<8x16xf32>
    %15 = tpu.matmul %9, %0, %cst_21 {dimension_numbers = #tpu.dot_dimension_numbers<[1], [0], [0], [1], [0, 0, 1, 1], [], []>} : vector<8x8xf32>, vector<8x16xf32>, vector<8x16xf32> -> vector<8x16xf32>
    %cst_22 = arith.constant dense<0.000000e+00> : vector<8x16xf32>
    %16 = tpu.matmul %11, %1, %cst_22 {dimension_numbers = #tpu.dot_dimension_numbers<[1], [0], [0], [1], [0, 0, 1, 1], [], []>} : vector<8x8xf32>, vector<8x16xf32>, vector<8x16xf32> -> vector<8x16xf32>
    %17 = arith.addf %15, %16 : vector<8x16xf32>
    %cst_23 = arith.constant dense<0.000000e+00> : vector<16x16xf32>
    %18 = tpu.matmul %2, %14, %cst_23 {dimension_numbers = #tpu.dot_dimension_numbers<[1], [0], [0], [1], [0, 0, 1, 1], [], []>} : vector<16x8xf32>, vector<8x16xf32>, vector<16x16xf32> -> vector<16x16xf32>
    %cst_24 = arith.constant dense<0.000000e+00> : vector<16x16xf32>
    %19 = tpu.matmul %3, %17, %cst_24 {dimension_numbers = #tpu.dot_dimension_numbers<[1], [0], [0], [1], [0, 0, 1, 1], [], []>} : vector<16x8xf32>, vector<8x16xf32>, vector<16x16xf32> -> vector<16x16xf32>
    %20 = arith.addf %18, %19 : vector<16x16xf32>
    %cst_25 = arith.constant 5.000000e-01 : f32
    %21 = vector.broadcast %cst_25 : f32 to vector<16x16xf32>
    %22 = arith.mulf %20, %21 : vector<16x16xf32>
    %c0_26 = arith.constant 0 : index
    %c0_27 = arith.constant 0 : index
    %c0_28 = arith.constant 0 : index
    %23 = vector.load %arg7[%c0_26, %c0_27, %c0_28] : memref<1x16x16xf32, #tpu.memory_space<vmem>>, vector<1x16x16xf32>
    %24 = vector.shape_cast %23 : vector<1x16x16xf32> to vector<16x16xf32>
    %25 = vector.shape_cast %22 : vector<16x16xf32> to vector<1x16x16xf32>
    tpu.vector_store %arg7[%c0_26, %c0_27, %c0_28], %25 {strides = array<i32>} : memref<1x16x16xf32, #tpu.memory_space<vmem>>, vector<1x16x16xf32>,
    return
  }
  func.func @transform_0(%arg0: i32) -> (i32, i32) {
    %c0_i32 = arith.constant 0 : i32
    %c0_i32_0 = arith.constant 0 : i32
    %c0_i32_1 = arith.constant 0 : i32
    return %c0_i32, %c0_i32_0 : i32, i32
  }
  func.func @transform_1(%arg0: i32) -> (i32, i32) {
    %c0_i32 = arith.constant 0 : i32
    %c0_i32_0 = arith.constant 0 : i32
    %c0_i32_1 = arith.constant 0 : i32
    return %c0_i32, %c0_i32_0 : i32, i32
  }
  func.func @transform_2(%arg0: i32) -> (i32, i32) {
    %c0_i32 = arith.constant 0 : i32
    %c0_i32_0 = arith.constant 0 : i32
    %c0_i32_1 = arith.constant 0 : i32
    return %c0_i32, %c0_i32_0 : i32, i32
  }
  func.func @transform_3(%arg0: i32) -> (i32, i32) {
    %c0_i32 = arith.constant 0 : i32
    %c0_i32_0 = arith.constant 0 : i32
    %c0_i32_1 = arith.constant 0 : i32
    return %c0_i32, %c0_i32_0 : i32, i32
  }
  func.func @transform_4(%arg0: i32) -> (i32, i32, i32) {
    %c0_i32 = arith.constant 0 : i32
    %c0_i32_0 = arith.constant 0 : i32
    %c0_i32_1 = arith.constant 0 : i32
    return %arg0, %c0_i32, %c0_i32_0 : i32, i32, i32
  }
  func.func @transform_5(%arg0: i32) -> (i32, i32, i32, i32) {
    %c0_i32 = arith.constant 0 : i32
    %c0_i32_0 = arith.constant 0 : i32
    %c0_i32_1 = arith.constant 0 : i32
    %c0_i32_2 = arith.constant 0 : i32
    return %arg0, %c0_i32, %c0_i32_0, %c0_i32_1 : i32, i32, i32, i32
  }
  func.func @transform_6(%arg0: i32) -> (i32, i32, i32) {
    %c0_i32 = arith.constant 0 : i32
    %c0_i32_0 = arith.constant 0 : i32
    %c0_i32_1 = arith.constant 0 : i32
    return %arg0, %c0_i32, %c0_i32_0 : i32, i32, i32
  }
}

</mosaic_0001>

<llo_original>
// kernel: tpu_custom_call.1
$region0: #{tpu_custom_call.1}
  #allocation0 [shape = 'u32[]', space=smem, size = 0x4, offset = 0x4, fixed_abs, tag = 'smem constant byte address 0x4 - core index']
  #allocation1 [shape = 'u32[144,128]{1,0:T(1,128)}', space=vmem, size = 0x12000, scoped, tag = 'internal scratch']
  %s0 = inlined_call_operand.vmem [shape: f32[8,16], index: 0, kind: input, shape index: {}]
  %s1 = inlined_call_operand.hbm [shape: f32[8,16], index: 1, kind: input, shape index: {}]
  %s2 = inlined_call_operand.vmem [shape: f32[16,8], index: 2, kind: input, shape index: {}]
  %s3 = inlined_call_operand.vmem [shape: f32[16,8], index: 3, kind: input, shape index: {}]
  %s4 = inlined_call_operand.hbm [shape: f32[2,8,8], index: 4, kind: input, shape index: {}]
  %s5 = inlined_call_operand.vmem [shape: f32[2,3,8,8], index: 5, kind: input, shape index: {}]
  %s6 = inlined_call_operand.hbm [shape: f32[2,16,16], index: 6, kind: output, shape index: {}]
  %s7 = sld [smem:[#allocation0]]
  $region65: #{tpu_custom_call.1} parent=0
    _
  %s9 = ssub.s32 1, %s7
  %s10 = scalar_select 0, %s9, %s7
  $region1: #{tpu_custom_call.1} parent=0
    #allocation2 [shape = 'u8[4096]{0}', space=vmem, size = 0x1000, scoped, tag = 'input window, operand 1, single buffered']
    #allocation3 [shape = 's32[2]{0}', space=sflag, size = 0x8, scoped, tag = 'scoped memory for tpu_custom_call.1']
    #allocation4 [shape = 's32[2]{0}', space=sflag, size = 0x8, scoped, tag = 'scoped memory for tpu_custom_call.1']
    #allocation5 [shape = 'u8[8192]{0}', space=vmem, size = 0x2000, scoped, tag = 'input window, operand 4']
    #allocation6 [shape = 's32[2]{0}', space=sflag, size = 0x8, scoped, tag = 'scoped memory for tpu_custom_call.1']
    #allocation7 [shape = 'u8[16384]{0}', space=vmem, size = 0x4000, scoped, tag = 'output window, operand 0']
    %11 = vsyncpa [#allocation3], 0
    %12 = vsyncpa [#allocation6], 0
    %s13 = scalar_lea.sflag [#allocation6], 1
    %14 = vsyncpa %s13, 0
    %15 = vsyncpa [#allocation4], 0
    %s16 = scalar_lea.sflag [#allocation4], 1
    %17 = vsyncpa %s16, 0
    loop: start=0, step=1, limit=4
    $region2: #{tpu_custom_call.1} parent=1 // loop_pre_header
      _
    $region3: #{tpu_custom_call.1} parent=1 // loop_header
      %s19 = sphi 0, %s23
      %p20 = scmp.ge.s32.totalorder %s19, 4
      %s27 = sphi 0, %s27
      %s29 = sphi 0, %s27
      %s30 = sphi 0, %s29
      %s44 = sphi 0, %s30
      %s48 = sphi 0, %s48
      %s50 = sphi 0, %s48
      %s51 = sphi 0, %s50
      %s65 = sphi 0, %s51
      %s69 = sphi 0, %s69
      %s71 = sphi 0, %s69
      %s72 = sphi 0, %s71
      %s86 = sphi 0, %s72
      %s90 = sphi 0, %s90
      %s92 = sphi 0, %s90
      %s93 = sphi 0, %s92
      %s107 = sphi 0, %s93
      %s113 = sphi 0, %s115
      %s116 = sphi 0, %s113
      %s117 = sphi 0, %s116
      %s133 = sphi 0, %s117
      %s139 = sphi 0, %s141
      %s142 = sphi 0, %s139
      %s143 = sphi 0, %s142
      %s159 = sphi 0, %s143
      %s165 = sphi 0, %s167
      %s168 = sphi 0, %s165
      %s169 = sphi 0, %s168
      %s185 = sphi 0, %s169
    $region4: #{tpu_custom_call.1} parent=1 // loop_header_branch
      %22 = sbr.rel (%p20) target = $region8
    $region5: #{tpu_custom_call.1} parent=1 // loop_body
      %s24 = ssub.s32 %s19, 1
      %s25 = ssub.s32 %s19, 2
      %s26 = sadd.s32 %s19, 1
      %s28 = sadd.s32 %s27, 1
      %p31 = scmp.eq.s32.totalorder %s19, 1
      %p32 = scmp.ne.s32.totalorder %s27, %s29
      %p33 = scmp.eq.s32.totalorder %s19, 0
      %p34 = por %p32, %p33
      %p35 = scmp.ne.s32.totalorder %s27, %s29
      %p36 = scmp.eq.s32.totalorder %s24, 1
      %p37 = por %p35, %p36
      %p38 = scmp.ne.s32.totalorder %s29, %s30
      %p39 = scmp.eq.s32.totalorder %s24, 0
      %p40 = por %p38, %p39
      %p41 = scmp.ne.s32.totalorder %s29, %s30
      %p42 = scmp.eq.s32.totalorder %s25, 1
      %p43 = por %p41, %p42
      %p45 = scmp.ne.s32.totalorder %s30, %s44
      %p46 = scmp.eq.s32.totalorder %s25, 0
      %p47 = por %p45, %p46
      %s49 = sadd.s32 %s48, 1
      %p52 = scmp.eq.s32.totalorder %s19, 1
      %p53 = scmp.ne.s32.totalorder %s48, %s50
      %p54 = scmp.eq.s32.totalorder %s19, 0
      %p55 = por %p53, %p54
      %p56 = scmp.ne.s32.totalorder %s48, %s50
      %p57 = scmp.eq.s32.totalorder %s24, 1
      %p58 = por %p56, %p57
      %p59 = scmp.ne.s32.totalorder %s50, %s51
      %p60 = scmp.eq.s32.totalorder %s24, 0
      %p61 = por %p59, %p60
      %p62 = scmp.ne.s32.totalorder %s50, %s51
      %p63 = scmp.eq.s32.totalorder %s25, 1
      %p64 = por %p62, %p63
      %p66 = scmp.ne.s32.totalorder %s51, %s65
      %p67 = scmp.eq.s32.totalorder %s25, 0
      %p68 = por %p66, %p67
      %s70 = sadd.s32 %s69, 1
      %p73 = scmp.eq.s32.totalorder %s19, 1
      %p74 = scmp.ne.s32.totalorder %s69, %s71
      %p75 = scmp.eq.s32.totalorder %s19, 0
      %p76 = por %p74, %p75
      %p77 = scmp.ne.s32.totalorder %s69, %s71
      %p78 = scmp.eq.s32.totalorder %s24, 1
      %p79 = por %p77, %p78
      %p80 = scmp.ne.s32.totalorder %s71, %s72
      %p81 = scmp.eq.s32.totalorder %s24, 0
      %p82 = por %p80, %p81
      %p83 = scmp.ne.s32.totalorder %s71, %s72
      %p84 = scmp.eq.s32.totalorder %s25, 1
      %p85 = por %p83, %p84
      %p87 = scmp.ne.s32.totalorder %s72, %s86
      %p88 = scmp.eq.s32.totalorder %s25, 0
      %p89 = por %p87, %p88
      %s91 = sadd.s32 %s90, 1
      %p94 = scmp.eq.s32.totalorder %s19, 1
      %p95 = scmp.ne.s32.totalorder %s90, %s92
      %p96 = scmp.eq.s32.totalorder %s19, 0
      %p97 = por %p95, %p96
      %p98 = scmp.ne.s32.totalorder %s90, %s92
      %p99 = scmp.eq.s32.totalorder %s24, 1
      %p100 = por %p98, %p99
      %p101 = scmp.ne.s32.totalorder %s92, %s93
      %p102 = scmp.eq.s32.totalorder %s24, 0
      %p103 = por %p101, %p102
      %p104 = scmp.ne.s32.totalorder %s92, %s93
      %p105 = scmp.eq.s32.totalorder %s25, 1
      %p106 = por %p104, %p105
      %p108 = scmp.ne.s32.totalorder %s93, %s107
      %p109 = scmp.eq.s32.totalorder %s25, 0
      %p110 = por %p108, %p109
      %s111 = ssub.s32 %s19, %s26
      %p112 = scmp.eq.s32.totalorder %s111, 0
      %s114 = sadd.s32 %s113, 1
      %s115 = scalar_select %p112, %s113, %s114
      %p118 = pneg %p112
      %p119 = scmp.eq.s32.totalorder %s19, 1
      %p120 = por %p118, %p119
      %p121 = scmp.ne.s32.totalorder %s113, %s116
      %p122 = scmp.eq.s32.totalorder %s19, 0
      %p123 = por %p121, %p122
      %p124 = scmp.ne.s32.totalorder %s113, %s116
      %p125 = scmp.eq.s32.totalorder %s24, 1
      %p126 = por %p124, %p125
      %p127 = scmp.ne.s32.totalorder %s116, %s117
      %p128 = scmp.eq.s32.totalorder %s24, 0
      %p129 = por %p127, %p128
      %p130 = scmp.ne.s32.totalorder %s116, %s117
      %p131 = scmp.eq.s32.totalorder %s25, 1
      %p132 = por %p130, %p131
      %p134 = scmp.ne.s32.totalorder %s117, %s133
      %p135 = scmp.eq.s32.totalorder %s25, 0
      %p136 = por %p134, %p135
      %s137 = ssub.s32 %s19, %s26
      %p138 = scmp.eq.s32.totalorder %s137, 0
      %s140 = sadd.s32 %s139, 1
      %s141 = scalar_select %p138, %s139, %s140
      %p144 = pneg %p138
      %p145 = scmp.eq.s32.totalorder %s19, 1
      %p146 = por %p144, %p145
      %p147 = scmp.ne.s32.totalorder %s139, %s142
      %p148 = scmp.eq.s32.totalorder %s19, 0
      %p149 = por %p147, %p148
      %p150 = scmp.ne.s32.totalorder %s139, %s142
      %p151 = scmp.eq.s32.totalorder %s24, 1
      %p152 = por %p150, %p151
      %p153 = scmp.ne.s32.totalorder %s142, %s143
      %p154 = scmp.eq.s32.totalorder %s24, 0
      %p155 = por %p153, %p154
      %p156 = scmp.ne.s32.totalorder %s142, %s143
      %p157 = scmp.eq.s32.totalorder %s25, 1
      %p158 = por %p156, %p157
      %p160 = scmp.ne.s32.totalorder %s143, %s159
      %p161 = scmp.eq.s32.totalorder %s25, 0
      %p162 = por %p160, %p161
      %s163 = ssub.s32 %s19, %s26
      %p164 = scmp.eq.s32.totalorder %s163, 0
      %s166 = sadd.s32 %s165, 1
      %s167 = scalar_select %p164, %s165, %s166
      %p170 = pneg %p164
      %p171 = scmp.eq.s32.totalorder %s19, 1
      %p172 = por %p170, %p171
      %p173 = scmp.ne.s32.totalorder %s165, %s168
      %p174 = scmp.eq.s32.totalorder %s19, 0
      %p175 = por %p173, %p174
      %p176 = scmp.ne.s32.totalorder %s165, %s168
      %p177 = scmp.eq.s32.totalorder %s24, 1
      %p178 = por %p176, %p177
      %p179 = scmp.ne.s32.totalorder %s168, %s169
      %p180 = scmp.eq.s32.totalorder %s24, 0
      %p181 = por %p179, %p180
      %p182 = scmp.ne.s32.totalorder %s168, %s169
      %p183 = scmp.eq.s32.totalorder %s25, 1
      %p184 = por %p182, %p183
      %p186 = scmp.ne.s32.totalorder %s169, %s185
      %p187 = scmp.eq.s32.totalorder %s25, 0
      %p188 = por %p186, %p187
      %p189 = scmp.le.s32.totalorder 1, %s19
      %p190 = scmp.lt.s32.totalorder %s19, 3
      %p191 = pnand %p189, %p190
      %p192 = pneg %p191
      // Predicated region
      $region9: #{tpu_custom_call.1} parent=5 // pred_check
        _
      $region10: #{tpu_custom_call.1} parent=5 // pred_check_branch
        %194 = sbr.rel (%p191) target = $region12
      $region11: #{tpu_custom_call.1} parent=5 // pred_region
        %s195 = ssub.s32 %s19, 1
        // Predicated region
        $region13: #{tpu_custom_call.1} parent=11 // pred_check
          %p196 = pneg %p40
        $region14: #{tpu_custom_call.1} parent=11 // pred_check_branch
          %198 = sbr.rel (%p196) target = $region16
        $region15: #{tpu_custom_call.1} parent=11 // pred_region
          _
        $region16: #{tpu_custom_call.1} parent=11 // pred_fallthru
          _
        // Predicated region
        $region17: #{tpu_custom_call.1} parent=11 // pred_check
          %p199 = pneg %p61
        $region18: #{tpu_custom_call.1} parent=11 // pred_check_branch
          %201 = sbr.rel (%p199) target = $region20
        $region19: #{tpu_custom_call.1} parent=11 // pred_region
          %s203 = ssub.s32 128, 128
          %204 = vsyncadd [#allocation3], %s203
          %s206 = sshll.u32 [#allocation2], 4
          %s207 = int_to_ptr.vmem [resolvable:$true] %s206
          %209 = dma.hbm_to_vmem [thread:$0]  %s1, 128, %s207, [#allocation3]
        $region20: #{tpu_custom_call.1} parent=11 // pred_fallthru
          _
        // Predicated region
        $region21: #{tpu_custom_call.1} parent=11 // pred_check
          %p210 = pneg %p82
        $region22: #{tpu_custom_call.1} parent=11 // pred_check_branch
          %212 = sbr.rel (%p210) target = $region24
        $region23: #{tpu_custom_call.1} parent=11 // pred_region
          _
        $region24: #{tpu_custom_call.1} parent=11 // pred_fallthru
          _
        // Predicated region
        $region25: #{tpu_custom_call.1} parent=11 // pred_check
          %p213 = pneg %p103
        $region26: #{tpu_custom_call.1} parent=11 // pred_check_branch
          %215 = sbr.rel (%p213) target = $region28
        $region27: #{tpu_custom_call.1} parent=11 // pred_region
          _
        $region28: #{tpu_custom_call.1} parent=11 // pred_fallthru
          _
      $region12: #{tpu_custom_call.1} parent=5 // pred_fallthru
        _
      %p216 = scmp.lt.s32.totalorder %s19, 2
      // Predicated region
      $region29: #{tpu_custom_call.1} parent=5 // pred_check
        %p217 = pneg %p216
      $region30: #{tpu_custom_call.1} parent=5 // pred_check_branch
        %219 = sbr.rel (%p217) target = $region32
      $region31: #{tpu_custom_call.1} parent=5 // pred_region
        // Predicated region
        $region33: #{tpu_custom_call.1} parent=31 // pred_check
          %p220 = pneg %p123
        $region34: #{tpu_custom_call.1} parent=31 // pred_check_branch
          %222 = sbr.rel (%p220) target = $region36
        $region35: #{tpu_custom_call.1} parent=31 // pred_region
          %s223 = sand.u32 %s113, 1
          %s224 = scalar_lea.sflag [#allocation6], %s223
          %s225 = sand.u32 %s113, 1
          %s226 = smul.addr %s225, 8
          %s227 = scalar_lea.vmem [#allocation5], %s226
          %s229 = ssub.s32 128, 128
          %230 = vsyncadd %s224, %s229
          %s231 = smul.addr %s19, 128
          %s232 = scalar_lea.hbm %s4, %s231
          %s234 = sshll.u32 %s227, 4
          %s235 = int_to_ptr.vmem [resolvable:$true] %s234
          %237 = dma.hbm_to_vmem [thread:$0]  %s232, 128, %s235, %s224
        $region36: #{tpu_custom_call.1} parent=31 // pred_fallthru
          _
        // Predicated region
        $region37: #{tpu_custom_call.1} parent=31 // pred_check
          %p238 = pneg %p149
        $region38: #{tpu_custom_call.1} parent=31 // pred_check_branch
          %240 = sbr.rel (%p238) target = $region40
        $region39: #{tpu_custom_call.1} parent=31 // pred_region
          %p241 = scmp.lt.s32.totalorder %s19, 1
          %s242 = scalar_select %p241, %s19, 1
          %s243 = smul.addr %s242, 3
          %s244 = smul.addr %s243, 8
          %s245 = scalar_lea.vmem %s5, %s244
        $region40: #{tpu_custom_call.1} parent=31 // pred_fallthru
          _
      $region32: #{tpu_custom_call.1} parent=5 // pred_fallthru
        _
      %p246 = scmp.le.s32.totalorder 1, %s19
      %p247 = scmp.lt.s32.totalorder %s19, 3
      %p248 = pnand %p246, %p247
      %p249 = pneg %p248
      // Predicated region
      $region41: #{tpu_custom_call.1} parent=5 // pred_check
        _
      $region42: #{tpu_custom_call.1} parent=5 // pred_check_branch
        %251 = sbr.rel (%p248) target = $region44
      $region43: #{tpu_custom_call.1} parent=5 // pred_region
        %s252 = ssub.s32 %s19, 1
        // Predicated region
        $region45: #{tpu_custom_call.1} parent=43 // pred_check
          %p253 = pneg %p61
        $region46: #{tpu_custom_call.1} parent=43 // pred_check_branch
          %255 = sbr.rel (%p253) target = $region48
        $region47: #{tpu_custom_call.1} parent=43 // pred_region
          %256 = dma.done [#allocation3], 128
        $region48: #{tpu_custom_call.1} parent=43 // pred_fallthru
          _
        %s257 = sand.u32 %s116, 1
        %s258 = scalar_lea.sflag [#allocation6], %s257
        %s259 = sand.u32 %s116, 1
        %s260 = smul.addr %s259, 8
        %s261 = scalar_lea.vmem [#allocation5], %s260
        // Predicated region
        $region49: #{tpu_custom_call.1} parent=43 // pred_check
          %p262 = pneg %p129
        $region50: #{tpu_custom_call.1} parent=43 // pred_check_branch
          %264 = sbr.rel (%p262) target = $region52
        $region51: #{tpu_custom_call.1} parent=43 // pred_region
          %265 = dma.done %s258, 128
        $region52: #{tpu_custom_call.1} parent=43 // pred_fallthru
          _
        %p266 = pneg %p40
        %p267 = pneg %p37
        %p268 = pneg %p61
        %p269 = pneg %p58
        %p270 = pneg %p82
        %p271 = pneg %p79
        %p272 = pneg %p103
        %p273 = pneg %p100
        %s274 = sand.u32 %s116, 1
        %s275 = scalar_lea.sflag [#allocation6], %s274
        %s276 = sand.u32 %s116, 1
        %s277 = smul.addr %s276, 8
        %s278 = scalar_lea.vmem [#allocation5], %s277
        %p279 = pneg %p129
        %p280 = pneg %p126
        %p281 = scmp.lt.s32.totalorder %s24, 1
        %s282 = scalar_select %p281, %s24, 1
        %s283 = smul.addr %s282, 3
        %s284 = smul.addr %s283, 8
        %s285 = scalar_lea.vmem %s5, %s284
        %p286 = pneg %p155
        %p287 = pneg %p152
        %p288 = pneg %p181
        %p289 = pneg %p178
        %s290 = sand.u32 %s168, 1
        %s291 = scalar_lea.sflag [#allocation4], %s290
        %s292 = sand.u32 %s168, 1
        %s293 = smul.addr %s292, 16
        %s294 = scalar_lea.vmem [#allocation7], %s293
        %p295 = scmp.lt.s32.totalorder %s24, 1
        %s296 = scalar_select %p295, %s24, 1
        %s297 = smul.addr %s296, 3
        %s298 = smul.addr %s297, 8
        %s299 = scalar_lea.vmem %s5, %s298
        %v300 = vld [vmem:[%s0] sm:$0xff]
        %v301 = vld [vmem:[#allocation2] sm:$0xff]
        %v302 = vld [vmem:[%s2] sm:$0xff]
        %v303 = vld [vmem:[%s2 + $0x8] sm:$0xff]
        %v304 = vld [vmem:[%s3] sm:$0xff]
        %v305 = vld [vmem:[%s3 + $0x8] sm:$0xff]
        %v306 = vld [vmem:[%s261] sm:$0xff]
        %v307 = vld [vmem:[%s299] sm:$0xff]
        %s308 = scalar_lea.vmem %s299, 8
        %v309 = vld [vmem:[%s308] sm:$0xff]
        %s310 = scalar_lea.vmem %s299, 16
        %v311 = vld [vmem:[%s310] sm:$0xff]
        %vm312 = vcmask 64512
        %v314 = vsel %vm312, %v307, 0
        %316 = vmatprep.subr.mxu0 0.0
        %317 = vmatpush1.msra.mxu0 0.0
        %318 = vmatprep.subr.mxu0 0.0
        %319 = vmatpush1.msra.mxu0 0.0
        %320 = vmatprep.subr.mxu0 0.0
        %321 = vmatpush1.msra.mxu0 0.0
        %322 = vmatprep.subr.mxu0 0.0
        %323 = vmatpush1.msra.mxu0 0.0
        %324 = vmatprep.subr.mxu0 0.0
        %325 = vmatpush1.msra.mxu0 0.0
        %326 = vmatprep.subr.mxu0 0.0
        %327 = vmatpush1.msra.mxu0 0.0
        %328 = vmatprep.subr.mxu0 0.0
        %329 = vmatpush1.msra.mxu0 0.0
        %330 = vmatprep.subr.mxu0 0.0
        %331 = vmatpush1.msra.mxu0 0.0
        %332 = vmatprep.subr.mxu0 0.0
        %333 = vmatpush1.msra.mxu0 0.0
        %334 = vmatprep.subr.mxu0 0.0
        %335 = vmatpush1.msra.mxu0 0.0
        %336 = vmatprep.subr.mxu0 0.0
        %337 = vmatpush1.msra.mxu0 0.0
        %338 = vmatprep.subr.mxu0 0.0
        %339 = vmatpush1.msra.mxu0 0.0
        %340 = vmatprep.subr.mxu0 0.0
        %341 = vmatpush1.msra.mxu0 0.0
        %342 = vmatprep.subr.mxu0 0.0
        %343 = vmatpush1.msra.mxu0 0.0
        %344 = vmatprep.subr.mxu0 0.0
        %345 = vmatpush1.msra.mxu0 0.0
        %346 = vmatprep.subr.mxu0 0.0
        %347 = vmatpush1.msra.mxu0 %v301
        %348 = vmatprep.subr.mxu0 0.0
        %349 = vmatpush2.msra.mxu0 0.0
        %350 = vmatprep.subr.mxu0 0.0
        %351 = vmatpush2.msra.mxu0 0.0
        %352 = vmatprep.subr.mxu0 0.0
        %353 = vmatpush2.msra.mxu0 0.0
        %354 = vmatprep.subr.mxu0 0.0
        %355 = vmatpush2.msra.mxu0 0.0
        %356 = vmatprep.subr.mxu0 0.0
        %357 = vmatpush2.msra.mxu0 0.0
        %358 = vmatprep.subr.mxu0 0.0
        %359 = vmatpush2.msra.mxu0 0.0
        %360 = vmatprep.subr.mxu0 0.0
        %361 = vmatpush2.msra.mxu0 0.0
        %362 = vmatprep.subr.mxu0 0.0
        %363 = vmatpush2.msra.mxu0 0.0
        %364 = vmatprep.subr.mxu0 0.0
        %365 = vmatpush2.msra.mxu0 0.0
        %366 = vmatprep.subr.mxu0 0.0
        %367 = vmatpush2.msra.mxu0 0.0
        %368 = vmatprep.subr.mxu0 0.0
        %369 = vmatpush2.msra.mxu0 0.0
        %370 = vmatprep.subr.mxu0 0.0
        %371 = vmatpush2.msra.mxu0 0.0
        %372 = vmatprep.subr.mxu0 0.0
        %373 = vmatpush2.msra.mxu0 0.0
        %374 = vmatprep.subr.mxu0 0.0
        %375 = vmatpush2.msra.mxu0 0.0
        %376 = vmatprep.subr.mxu0 0.0
        %377 = vmatpush2.msra.mxu0 0.0
        %378 = vmatprep.subr.mxu0 0.0
        %379 = vmatpush2.msra.mxu0 0.0
        %380 = vmatprep.mubr.f32.mxu0 0.0
        %381 = vmatmul.mubr.f32.gmra.mxu0 %v314
        %v382 = vpop.f32.mrf.mxu0
        %v383 = vadd.f32 0.0, %v382
        %v384 = vpop.f32.mrf.mxu0
        %385 = vdwg.mxu0
        %v387 = vsel %vm312, %v306, 0
        %389 = vmatprep.subr.mxu0 0.0
        %390 = vmatpush1.msra.mxu0 0.0
        %391 = vmatprep.subr.mxu0 0.0
        %392 = vmatpush1.msra.mxu0 0.0
        %393 = vmatprep.subr.mxu0 0.0
        %394 = vmatpush1.msra.mxu0 0.0
        %395 = vmatprep.subr.mxu0 0.0
        %396 = vmatpush1.msra.mxu0 0.0
        %397 = vmatprep.subr.mxu0 0.0
        %398 = vmatpush1.msra.mxu0 0.0
        %399 = vmatprep.subr.mxu0 0.0
        %400 = vmatpush1.msra.mxu0 0.0
        %401 = vmatprep.subr.mxu0 0.0
        %402 = vmatpush1.msra.mxu0 0.0
        %403 = vmatprep.subr.mxu0 0.0
        %404 = vmatpush1.msra.mxu0 0.0
        %405 = vmatprep.subr.mxu0 0.0
        %406 = vmatpush1.msra.mxu0 0.0
        %407 = vmatprep.subr.mxu0 0.0
        %408 = vmatpush1.msra.mxu0 0.0
        %409 = vmatprep.subr.mxu0 0.0
        %410 = vmatpush1.msra.mxu0 0.0
        %411 = vmatprep.subr.mxu0 0.0
        %412 = vmatpush1.msra.mxu0 0.0
        %413 = vmatprep.subr.mxu0 0.0
        %414 = vmatpush1.msra.mxu0 0.0
        %415 = vmatprep.subr.mxu0 0.0
        %416 = vmatpush1.msra.mxu0 0.0
        %417 = vmatprep.subr.mxu0 0.0
        %418 = vmatpush1.msra.mxu0 0.0
        %419 = vmatprep.subr.mxu0 0.0
        %420 = vmatpush1.msra.mxu0 %v300
        %421 = vmatprep.subr.mxu0 0.0
        %422 = vmatpush2.msra.mxu0 0.0
        %423 = vmatprep.subr.mxu0 0.0
        %424 = vmatpush2.msra.mxu0 0.0
        %425 = vmatprep.subr.mxu0 0.0
        %426 = vmatpush2.msra.mxu0 0.0
        %427 = vmatprep.subr.mxu0 0.0
        %428 = vmatpush2.msra.mxu0 0.0
        %429 = vmatprep.subr.mxu0 0.0
        %430 = vmatpush2.msra.mxu0 0.0
        %431 = vmatprep.subr.mxu0 0.0
        %432 = vmatpush2.msra.mxu0 0.0
        %433 = vmatprep.subr.mxu0 0.0
        %434 = vmatpush2.msra.mxu0 0.0
        %435 = vmatprep.subr.mxu0 0.0
        %436 = vmatpush2.msra.mxu0 0.0
        %437 = vmatprep.subr.mxu0 0.0
        %438 = vmatpush2.msra.mxu0 0.0
        %439 = vmatprep.subr.mxu0 0.0
        %440 = vmatpush2.msra.mxu0 0.0
        %441 = vmatprep.subr.mxu0 0.0
        %442 = vmatpush2.msra.mxu0 0.0
        %443 = vmatprep.subr.mxu0 0.0
        %444 = vmatpush2.msra.mxu0 0.0
        %445 = vmatprep.subr.mxu0 0.0
        %446 = vmatpush2.msra.mxu0 0.0
        %447 = vmatprep.subr.mxu0 0.0
        %448 = vmatpush2.msra.mxu0 0.0
        %449 = vmatprep.subr.mxu0 0.0
        %450 = vmatpush2.msra.mxu0 0.0
        %451 = vmatprep.subr.mxu0 0.0
        %452 = vmatpush2.msra.mxu0 0.0
        %453 = vmatprep.mubr.f32.mxu0 0.0
        %454 = vmatmul.mubr.f32.gmra.mxu0 %v387
        %v455 = vpop.f32.mrf.mxu0
        %v456 = vadd.f32 %v383, %v455
        %v457 = vpop.f32.mrf.mxu0
        %458 = vdwg.mxu0
        %v460 = vsel %vm312, %v311, 0
        %462 = vmatprep.subr.mxu0 0.0
        %463 = vmatpush1.msra.mxu0 0.0
        %464 = vmatprep.subr.mxu0 0.0
        %465 = vmatpush1.msra.mxu0 0.0
        %466 = vmatprep.subr.mxu0 0.0
        %467 = vmatpush1.msra.mxu0 0.0
        %468 = vmatprep.subr.mxu0 0.0
        %469 = vmatpush1.msra.mxu0 0.0
        %470 = vmatprep.subr.mxu0 0.0
        %471 = vmatpush1.msra.mxu0 0.0
        %472 = vmatprep.subr.mxu0 0.0
        %473 = vmatpush1.msra.mxu0 0.0
        %474 = vmatprep.subr.mxu0 0.0
        %475 = vmatpush1.msra.mxu0 0.0
        %476 = vmatprep.subr.mxu0 0.0
        %477 = vmatpush1.msra.mxu0 0.0
        %478 = vmatprep.subr.mxu0 0.0
        %479 = vmatpush1.msra.mxu0 0.0
        %480 = vmatprep.subr.mxu0 0.0
        %481 = vmatpush1.msra.mxu0 0.0
        %482 = vmatprep.subr.mxu0 0.0
        %483 = vmatpush1.msra.mxu0 0.0
        %484 = vmatprep.subr.mxu0 0.0
        %485 = vmatpush1.msra.mxu0 0.0
        %486 = vmatprep.subr.mxu0 0.0
        %487 = vmatpush1.msra.mxu0 0.0
        %488 = vmatprep.subr.mxu0 0.0
        %489 = vmatpush1.msra.mxu0 0.0
        %490 = vmatprep.subr.mxu0 0.0
        %491 = vmatpush1.msra.mxu0 0.0
        %492 = vmatprep.subr.mxu0 0.0
        %493 = vmatpush1.msra.mxu0 %v301
        %494 = vmatprep.subr.mxu0 0.0
        %495 = vmatpush2.msra.mxu0 0.0
        %496 = vmatprep.subr.mxu0 0.0
        %497 = vmatpush2.msra.mxu0 0.0
        %498 = vmatprep.subr.mxu0 0.0
        %499 = vmatpush2.msra.mxu0 0.0
        %500 = vmatprep.subr.mxu0 0.0
        %501 = vmatpush2.msra.mxu0 0.0
        %502 = vmatprep.subr.mxu0 0.0
        %503 = vmatpush2.msra.mxu0 0.0
        %504 = vmatprep.subr.mxu0 0.0
        %505 = vmatpush2.msra.mxu0 0.0
        %506 = vmatprep.subr.mxu0 0.0
        %507 = vmatpush2.msra.mxu0 0.0
        %508 = vmatprep.subr.mxu0 0.0
        %509 = vmatpush2.msra.mxu0 0.0
        %510 = vmatprep.subr.mxu0 0.0
        %511 = vmatpush2.msra.mxu0 0.0
        %512 = vmatprep.subr.mxu0 0.0
        %513 = vmatpush2.msra.mxu0 0.0
        %514 = vmatprep.subr.mxu0 0.0
        %515 = vmatpush2.msra.mxu0 0.0
        %516 = vmatprep.subr.mxu0 0.0
        %517 = vmatpush2.msra.mxu0 0.0
        %518 = vmatprep.subr.mxu0 0.0
        %519 = vmatpush2.msra.mxu0 0.0
        %520 = vmatprep.subr.mxu0 0.0
        %521 = vmatpush2.msra.mxu0 0.0
        %522 = vmatprep.subr.mxu0 0.0
        %523 = vmatpush2.msra.mxu0 0.0
        %524 = vmatprep.subr.mxu0 0.0
        %525 = vmatpush2.msra.mxu0 0.0
        %526 = vmatprep.mubr.f32.mxu0 0.0
        %527 = vmatmul.mubr.f32.gmra.mxu0 %v460
        %v528 = vpop.f32.mrf.mxu0
        %v529 = vadd.f32 0.0, %v528
        %v530 = vpop.f32.mrf.mxu0
        %531 = vdwg.mxu0
        %v533 = vsel %vm312, %v309, 0
        %535 = vmatprep.subr.mxu0 0.0
        %536 = vmatpush1.msra.mxu0 0.0
        %537 = vmatprep.subr.mxu0 0.0
        %538 = vmatpush1.msra.mxu0 0.0
        %539 = vmatprep.subr.mxu0 0.0
        %540 = vmatpush1.msra.mxu0 0.0
        %541 = vmatprep.subr.mxu0 0.0
        %542 = vmatpush1.msra.mxu0 0.0
        %543 = vmatprep.subr.mxu0 0.0
        %544 = vmatpush1.msra.mxu0 0.0
        %545 = vmatprep.subr.mxu0 0.0
        %546 = vmatpush1.msra.mxu0 0.0
        %547 = vmatprep.subr.mxu0 0.0
        %548 = vmatpush1.msra.mxu0 0.0
        %549 = vmatprep.subr.mxu0 0.0
        %550 = vmatpush1.msra.mxu0 0.0
        %551 = vmatprep.subr.mxu0 0.0
        %552 = vmatpush1.msra.mxu0 0.0
        %553 = vmatprep.subr.mxu0 0.0
        %554 = vmatpush1.msra.mxu0 0.0
        %555 = vmatprep.subr.mxu0 0.0
        %556 = vmatpush1.msra.mxu0 0.0
        %557 = vmatprep.subr.mxu0 0.0
        %558 = vmatpush1.msra.mxu0 0.0
        %559 = vmatprep.subr.mxu0 0.0
        %560 = vmatpush1.msra.mxu0 0.0
        %561 = vmatprep.subr.mxu0 0.0
        %562 = vmatpush1.msra.mxu0 0.0
        %563 = vmatprep.subr.mxu0 0.0
        %564 = vmatpush1.msra.mxu0 0.0
        %565 = vmatprep.subr.mxu0 0.0
        %566 = vmatpush1.msra.mxu0 %v300
        %567 = vmatprep.subr.mxu0 0.0
        %568 = vmatpush2.msra.mxu0 0.0
        %569 = vmatprep.subr.mxu0 0.0
        %570 = vmatpush2.msra.mxu0 0.0
        %571 = vmatprep.subr.mxu0 0.0
        %572 = vmatpush2.msra.mxu0 0.0
        %573 = vmatprep.subr.mxu0 0.0
        %574 = vmatpush2.msra.mxu0 0.0
        %575 = vmatprep.subr.mxu0 0.0
        %576 = vmatpush2.msra.mxu0 0.0
        %577 = vmatprep.subr.mxu0 0.0
        %578 = vmatpush2.msra.mxu0 0.0
        %579 = vmatprep.subr.mxu0 0.0
        %580 = vmatpush2.msra.mxu0 0.0
        %581 = vmatprep.subr.mxu0 0.0
        %582 = vmatpush2.msra.mxu0 0.0
        %583 = vmatprep.subr.mxu0 0.0
        %584 = vmatpush2.msra.mxu0 0.0
        %585 = vmatprep.subr.mxu0 0.0
        %586 = vmatpush2.msra.mxu0 0.0
        %587 = vmatprep.subr.mxu0 0.0
        %588 = vmatpush2.msra.mxu0 0.0
        %589 = vmatprep.subr.mxu0 0.0
        %590 = vmatpush2.msra.mxu0 0.0
        %591 = vmatprep.subr.mxu0 0.0
        %592 = vmatpush2.msra.mxu0 0.0
        %593 = vmatprep.subr.mxu0 0.0
        %594 = vmatpush2.msra.mxu0 0.0
        %595 = vmatprep.subr.mxu0 0.0
        %596 = vmatpush2.msra.mxu0 0.0
        %597 = vmatprep.subr.mxu0 0.0
        %598 = vmatpush2.msra.mxu0 0.0
        %599 = vmatprep.mubr.f32.mxu0 0.0
        %600 = vmatmul.mubr.f32.gmra.mxu0 %v533
        %v601 = vpop.f32.mrf.mxu0
        %v602 = vadd.f32 %v529, %v601
        %v603 = vpop.f32.mrf.mxu0
        %604 = vdwg.mxu0
        %v606 = vsel %vm312, %v304, 0
        %v609 = vsel %vm312, %v305, 0
        %611 = vmatprep.subr.mxu0 0.0
        %612 = vmatpush1.msra.mxu0 0.0
        %613 = vmatprep.subr.mxu0 0.0
        %614 = vmatpush1.msra.mxu0 0.0
        %615 = vmatprep.subr.mxu0 0.0
        %616 = vmatpush1.msra.mxu0 0.0
        %617 = vmatprep.subr.mxu0 0.0
        %618 = vmatpush1.msra.mxu0 0.0
        %619 = vmatprep.subr.mxu0 0.0
        %620 = vmatpush1.msra.mxu0 0.0
        %621 = vmatprep.subr.mxu0 0.0
        %622 = vmatpush1.msra.mxu0 0.0
        %623 = vmatprep.subr.mxu0 0.0
        %624 = vmatpush1.msra.mxu0 0.0
        %625 = vmatprep.subr.mxu0 0.0
        %626 = vmatpush1.msra.mxu0 0.0
        %627 = vmatprep.subr.mxu0 0.0
        %628 = vmatpush1.msra.mxu0 0.0
        %629 = vmatprep.subr.mxu0 0.0
        %630 = vmatpush1.msra.mxu0 0.0
        %631 = vmatprep.subr.mxu0 0.0
        %632 = vmatpush1.msra.mxu0 0.0
        %633 = vmatprep.subr.mxu0 0.0
        %634 = vmatpush1.msra.mxu0 0.0
        %635 = vmatprep.subr.mxu0 0.0
        %636 = vmatpush1.msra.mxu0 0.0
        %637 = vmatprep.subr.mxu0 0.0
        %638 = vmatpush1.msra.mxu0 0.0
        %639 = vmatprep.subr.mxu0 0.0
        %640 = vmatpush1.msra.mxu0 0.0
        %641 = vmatprep.subr.mxu0 0.0
        %642 = vmatpush1.msra.mxu0 %v602
        %643 = vmatprep.subr.mxu0 0.0
        %644 = vmatpush2.msra.mxu0 0.0
        %645 = vmatprep.subr.mxu0 0.0
        %646 = vmatpush2.msra.mxu0 0.0
        %647 = vmatprep.subr.mxu0 0.0
        %648 = vmatpush2.msra.mxu0 0.0
        %649 = vmatprep.subr.mxu0 0.0
        %650 = vmatpush2.msra.mxu0 0.0
        %651 = vmatprep.subr.mxu0 0.0
        %652 = vmatpush2.msra.mxu0 0.0
        %653 = vmatprep.subr.mxu0 0.0
        %654 = vmatpush2.msra.mxu0 0.0
        %655 = vmatprep.subr.mxu0 0.0
        %656 = vmatpush2.msra.mxu0 0.0
        %657 = vmatprep.subr.mxu0 0.0
        %658 = vmatpush2.msra.mxu0 0.0
        %659 = vmatprep.subr.mxu0 0.0
        %660 = vmatpush2.msra.mxu0 0.0
        %661 = vmatprep.subr.mxu0 0.0
        %662 = vmatpush2.msra.mxu0 0.0
        %663 = vmatprep.subr.mxu0 0.0
        %664 = vmatpush2.msra.mxu0 0.0
        %665 = vmatprep.subr.mxu0 0.0
        %666 = vmatpush2.msra.mxu0 0.0
        %667 = vmatprep.subr.mxu0 0.0
        %668 = vmatpush2.msra.mxu0 0.0
        %669 = vmatprep.subr.mxu0 0.0
        %670 = vmatpush2.msra.mxu0 0.0
        %671 = vmatprep.subr.mxu0 0.0
        %672 = vmatpush2.msra.mxu0 0.0
        %673 = vmatprep.subr.mxu0 0.0
        %674 = vmatpush2.msra.mxu0 0.0
        %675 = vmatprep.mubr.f32.mxu0 0.0
        %676 = vmatmul.mubr.f32.gmra.mxu0 %v606
        %v677 = vpop.f32.mrf.mxu0
        %v678 = vadd.f32 0.0, %v677
        %v679 = vpop.f32.mrf.mxu0
        %680 = vmatprep.mubr.f32.mxu0 0.0
        %681 = vmatmul.mubr.f32.gmra.mxu0 %v609
        %v682 = vpop.f32.mrf.mxu0
        %v683 = vadd.f32 0.0, %v682
        %v684 = vpop.f32.mrf.mxu0
        %685 = vdwg.mxu0
        %v687 = vsel %vm312, %v302, 0
        %v690 = vsel %vm312, %v303, 0
        %692 = vmatprep.subr.mxu0 0.0
        %693 = vmatpush1.msra.mxu0 0.0
        %694 = vmatprep.subr.mxu0 0.0
        %695 = vmatpush1.msra.mxu0 0.0
        %696 = vmatprep.subr.mxu0 0.0
        %697 = vmatpush1.msra.mxu0 0.0
        %698 = vmatprep.subr.mxu0 0.0
        %699 = vmatpush1.msra.mxu0 0.0
        %700 = vmatprep.subr.mxu0 0.0
        %701 = vmatpush1.msra.mxu0 0.0
        %702 = vmatprep.subr.mxu0 0.0
        %703 = vmatpush1.msra.mxu0 0.0
        %704 = vmatprep.subr.mxu0 0.0
        %705 = vmatpush1.msra.mxu0 0.0
        %706 = vmatprep.subr.mxu0 0.0
        %707 = vmatpush1.msra.mxu0 0.0
        %708 = vmatprep.subr.mxu0 0.0
        %709 = vmatpush1.msra.mxu0 0.0
        %710 = vmatprep.subr.mxu0 0.0
        %711 = vmatpush1.msra.mxu0 0.0
        %712 = vmatprep.subr.mxu0 0.0
        %713 = vmatpush1.msra.mxu0 0.0
        %714 = vmatprep.subr.mxu0 0.0
        %715 = vmatpush1.msra.mxu0 0.0
        %716 = vmatprep.subr.mxu0 0.0
        %717 = vmatpush1.msra.mxu0 0.0
        %718 = vmatprep.subr.mxu0 0.0
        %719 = vmatpush1.msra.mxu0 0.0
        %720 = vmatprep.subr.mxu0 0.0
        %721 = vmatpush1.msra.mxu0 0.0
        %722 = vmatprep.subr.mxu0 0.0
        %723 = vmatpush1.msra.mxu0 %v456
        %724 = vmatprep.subr.mxu0 0.0
        %725 = vmatpush2.msra.mxu0 0.0
        %726 = vmatprep.subr.mxu0 0.0
        %727 = vmatpush2.msra.mxu0 0.0
        %728 = vmatprep.subr.mxu0 0.0
        %729 = vmatpush2.msra.mxu0 0.0
        %730 = vmatprep.subr.mxu0 0.0
        %731 = vmatpush2.msra.mxu0 0.0
        %732 = vmatprep.subr.mxu0 0.0
        %733 = vmatpush2.msra.mxu0 0.0
        %734 = vmatprep.subr.mxu0 0.0
        %735 = vmatpush2.msra.mxu0 0.0
        %736 = vmatprep.subr.mxu0 0.0
        %737 = vmatpush2.msra.mxu0 0.0
        %738 = vmatprep.subr.mxu0 0.0
        %739 = vmatpush2.msra.mxu0 0.0
        %740 = vmatprep.subr.mxu0 0.0
        %741 = vmatpush2.msra.mxu0 0.0
        %742 = vmatprep.subr.mxu0 0.0
        %743 = vmatpush2.msra.mxu0 0.0
        %744 = vmatprep.subr.mxu0 0.0
        %745 = vmatpush2.msra.mxu0 0.0
        %746 = vmatprep.subr.mxu0 0.0
        %747 = vmatpush2.msra.mxu0 0.0
        %748 = vmatprep.subr.mxu0 0.0
        %749 = vmatpush2.msra.mxu0 0.0
        %750 = vmatprep.subr.mxu0 0.0
        %751 = vmatpush2.msra.mxu0 0.0
        %752 = vmatprep.subr.mxu0 0.0
        %753 = vmatpush2.msra.mxu0 0.0
        %754 = vmatprep.subr.mxu0 0.0
        %755 = vmatpush2.msra.mxu0 0.0
        %756 = vmatprep.mubr.f32.mxu0 0.0
        %757 = vmatmul.mubr.f32.gmra.mxu0 %v687
        %v758 = vpop.f32.mrf.mxu0
        %v759 = vadd.f32 %v678, %v758
        %v760 = vpop.f32.mrf.mxu0
        %761 = vmatprep.mubr.f32.mxu0 0.0
        %762 = vmatmul.mubr.f32.gmra.mxu0 %v690
        %v763 = vpop.f32.mrf.mxu0
        %v764 = vadd.f32 %v683, %v763
        %v765 = vpop.f32.mrf.mxu0
        %766 = vdwg.mxu0
        %v767 = vmul.f32 %v759, 0.5
        %v768 = vmul.f32 %v764, 0.5
        %vm769 = vcmask 130048
        %770 = vst.msk [vmem:[%s294] sm:$0xff] %vm769, %v767
        %771 = vst.msk [vmem:[%s294 + $0x8] sm:$0xff] %vm769, %v768
        %s772 = sand.u32 %s168, 1
        %s773 = scalar_lea.sflag [#allocation4], %s772
        %s774 = sand.u32 %s168, 1
        %s775 = smul.addr %s774, 16
        %s776 = scalar_lea.vmem [#allocation7], %s775
        // Predicated region
        $region53: #{tpu_custom_call.1} parent=43 // pred_check
          %p777 = pneg %p178
        $region54: #{tpu_custom_call.1} parent=43 // pred_check_branch
          %779 = sbr.rel (%p777) target = $region56
        $region55: #{tpu_custom_call.1} parent=43 // pred_region
          %s781 = ssub.s32 256, 256
          %782 = vsyncadd %s773, %s781
          %s783 = smul.addr %s24, 2
          %s784 = smul.addr %s783, 128
          %s785 = scalar_lea.hbm %s6, %s784
          %s786 = sshll.u32 %s776, 4
          %s787 = int_to_ptr.vmem [resolvable:$true] %s786
          %792 = dma.vmem_to_hbm [thread:$0]  %s787, 256, %s785, %s773, 128, 128, 8
        $region56: #{tpu_custom_call.1} parent=43 // pred_fallthru
          _
      $region44: #{tpu_custom_call.1} parent=5 // pred_fallthru
        _
      %p793 = scmp.le.s32.totalorder 2, %s19
      // Predicated region
      $region57: #{tpu_custom_call.1} parent=5 // pred_check
        %p794 = pneg %p793
      $region58: #{tpu_custom_call.1} parent=5 // pred_check_branch
        %796 = sbr.rel (%p794) target = $region60
      $region59: #{tpu_custom_call.1} parent=5 // pred_region
        %s797 = ssub.s32 %s19, 2
        // Predicated region
        $region61: #{tpu_custom_call.1} parent=59 // pred_check
          %p798 = pneg %p184
        $region62: #{tpu_custom_call.1} parent=59 // pred_check_branch
          %800 = sbr.rel (%p798) target = $region64
        $region63: #{tpu_custom_call.1} parent=59 // pred_region
          %s801 = sand.u32 %s169, 1
          %s802 = scalar_lea.sflag [#allocation4], %s801
          %s803 = sand.u32 %s169, 1
          %s804 = smul.addr %s803, 16
          %s805 = scalar_lea.vmem [#allocation7], %s804
          %806 = dma.done %s802, 256
        $region64: #{tpu_custom_call.1} parent=59 // pred_fallthru
          _
      $region60: #{tpu_custom_call.1} parent=5 // pred_fallthru
        _
    $region6: #{tpu_custom_call.1} parent=1 // loop_footer
      %s23 = sadd.s32 1, %s19
    $region7: #{tpu_custom_call.1} parent=1 // loop_footer_branch
      %18 = sbr.rel target = $region3
    $region8: #{tpu_custom_call.1} parent=1 // loop_exit
      _
    %807 = vsyncpa [#allocation3], 1
    %s808 = scalar_lea.sflag [#allocation3], 1
    %809 = vsyncpa %s808, 1
    %810 = vsyncpa [#allocation6], 1
    %s811 = scalar_lea.sflag [#allocation6], 1
    %812 = vsyncpa %s811, 1
    %813 = vsyncpa [#allocation4], 1
    %s814 = scalar_lea.sflag [#allocation4], 1
    %815 = vsyncpa %s814, 1

</llo_original>
